<compile_context>
chip_gen: v7x
topology: tpu7x:2x2x1
jax: 0.10.0
libtpu: 0.0.40
codegen_flags: <defaults>
</compile_context>

<pallas_src>
import functools

import jax
import jax.numpy as jnp
from jax.experimental import pallas as pl
from jax.experimental.pallas import tpu as pltpu

_EPS_DEFAULT = 1e-12  # matches SigSoftmax.__init__ default


def _sigsoftmax_body(x, eps):
    """x: (tm, D) f32 -> sigsoftmax over the last axis."""
    sig = 1.0 / (1.0 + jnp.exp(-x))              # exp -> EUP
    z = x + jnp.log(sig + jnp.float32(eps))      # log -> EUP
    m = jnp.max(z, axis=-1, keepdims=True)       # XLU lane reduce
    e = jnp.exp(z - m)                           # EUP
    s = jnp.sum(e, axis=-1, keepdims=True)       # XLU lane reduce
    return e / s                                 # exact divide (mem-bound kernel)


def _sigsoftmax_kernel(x_ref, o_ref, *, eps):
    x = x_ref[...].astype(jnp.float32)
    o_ref[...] = _sigsoftmax_body(x, eps).astype(o_ref.dtype)


def _sigsoftmax_masked_kernel(x_ref, m_ref, o_ref, *, eps):
    x = x_ref[...].astype(jnp.float32)
    x = jnp.where(m_ref[...] > jnp.float32(0.5), x, jnp.float32(-jnp.inf))
    o_ref[...] = _sigsoftmax_body(x, eps).astype(o_ref.dtype)


def _round_up(x, m):
    return ((x + m - 1) // m) * m


def _pick_tile_rows(n_rows, d, itemsize=4, target_tile_bytes=2 << 20,
                    max_rows=1024):
    """Row tile: multiple of 8, a few MiB per tile, never more than needed."""
    tm = max(1, target_tile_bytes // max(1, d * itemsize))
    tm = min(tm, max_rows, _round_up(n_rows, 8))
    tm = max(8, (tm // 8) * 8)
    return tm


@functools.partial(jax.jit, static_argnames=("dim", "epsilon", "tile_rows"))
def sigsoftmax(x, mask=None, *, dim=-1, epsilon=_EPS_DEFAULT, tile_rows=None):
    """SigSoftmax forward.  x: any shape; mask: optional bool, same shape."""
    ndim = x.ndim
    axis = dim % ndim
    if axis != ndim - 1:
        x = jnp.moveaxis(x, axis, -1)
        if mask is not None:
            mask = jnp.moveaxis(mask, axis, -1)

    work_shape = x.shape
    D = work_shape[-1]
    x2d = x.reshape(-1, D)
    M = x2d.shape[0]

    tm = _pick_tile_rows(M, D) if tile_rows is None else int(tile_rows)
    n_tiles = pl.cdiv(M, tm)
    Mp = n_tiles * tm
    pad = Mp - M
    if pad:
        x2d = jnp.pad(x2d, ((0, pad), (0, 0)))

    inputs = [x2d]
    in_specs = [pl.BlockSpec((tm, D), lambda i: (i, 0))]
    if mask is None:
        kernel = functools.partial(_sigsoftmax_kernel, eps=float(epsilon))
    else:
        m2d = mask.reshape(-1, D).astype(jnp.float32)
        if pad:
            # pad with "keep" so padded rows stay finite (discarded anyway)
            m2d = jnp.pad(m2d, ((0, pad), (0, 0)), constant_values=1.0)
        inputs.append(m2d)
        in_specs.append(pl.BlockSpec((tm, D), lambda i: (i, 0)))
        kernel = functools.partial(_sigsoftmax_masked_kernel, eps=float(epsilon))

    # VMEM budget: double-buffered input/output tiles + headroom for f32 temps.
    tile_bytes = tm * D * 4
    n_ops = len(inputs) + 1
    vmem_limit = min(2 * (2 * n_ops * tile_bytes) + (4 << 20), 100 << 20)
    vmem_limit = max(vmem_limit, 16 << 20)

    out = pl.pallas_call(
        kernel,
        out_shape=jax.ShapeDtypeStruct((Mp, D), x.dtype),
        grid_spec=pltpu.PrefetchScalarGridSpec(
            num_scalar_prefetch=0,
            grid=(n_tiles,),
            in_specs=in_specs,
            out_specs=pl.BlockSpec((tm, D), lambda i: (i, 0)),
        ),
        compiler_params=pltpu.CompilerParams(
            dimension_semantics=("parallel",),
            vmem_limit_bytes=int(vmem_limit),
        ),
    )(*inputs)

    if pad:
        out = out[:M]
    out = out.reshape(work_shape)
    if axis != ndim - 1:
        out = jnp.moveaxis(out, -1, axis)
    return out


def _reference(x, mask=None, eps=_EPS_DEFAULT):
    if mask is not None:
        x = jnp.where(mask, x, -jnp.inf)
    z = x + jnp.log(jax.nn.sigmoid(x) + eps)
    return jax.nn.softmax(z, axis=-1)


if __name__ == "__main__":
    key = jax.random.PRNGKey(0)

    # Case 1: no mask, lane-dense last dim (batch=2, seq=8, classes=128).
    B, S, D = 2, 8, 128
    x = jax.random.normal(key, (B, S, D), dtype=jnp.float32)
    out = jax.block_until_ready(sigsoftmax(x))
    ref = _reference(x)
    assert out.shape == (B, S, D)
    assert jnp.allclose(out, ref, atol=1e-3, rtol=1e-3), "no-mask mismatch"
    assert jnp.allclose(jnp.sum(out, axis=-1), 1.0, atol=1e-3), "rows not normalized"

    # Case 2: masked + ragged row count (exercises cdiv + padding + multi-tile grid).
    k1, k2 = jax.random.split(key)
    x2 = jax.random.normal(k1, (3, 5, D), dtype=jnp.float32)
    mask2 = jax.random.bernoulli(k2, 0.8, (3, 5, D))
    mask2 = mask2.at[..., 0].set(True)  # keep >=1 position per row (avoid NaN rows)
    out2 = jax.block_until_ready(sigsoftmax(x2, mask2, tile_rows=8))
    ref2 = _reference(x2, mask2)
    assert jnp.allclose(out2, ref2, atol=1e-3, rtol=1e-3), "masked mismatch"
    assert jnp.allclose(jnp.sum(out2, axis=-1), 1.0, atol=1e-3), "masked rows not normalized"

    print("KERNEL_OK")
</pallas_src>

<mosaic_0001>
module attributes {stable_mosaic.version = 11 : i64} {
  func.func @_sigsoftmax_kernel(%arg0: i32, %arg1: memref<16x128xf32, #tpu.memory_space<vmem>>, %arg2: memref<16x128xf32, #tpu.memory_space<vmem>>) attributes {dimension_semantics = [#tpu.dimension_semantics<parallel>], iteration_bounds = array<i64: 1>, scalar_prefetch = 0 : i64, scratch_operands = 0 : i64, tpu.core_type = #tpu.core_type<tc>, window_params = [{transform_indices = @transform_0, window_bounds = array<i64: 16, 128>}, {transform_indices = @transform_1, window_bounds = array<i64: 16, 128>}]} {
    %c0 = arith.constant 0 : index
    %c0_0 = arith.constant 0 : index
    %0 = vector.load %arg1[%c0, %c0_0] : memref<16x128xf32, #tpu.memory_space<vmem>>, vector<16x128xf32>
    %cst = arith.constant 0.000000e+00 : f32
    %1 = vector.broadcast %cst : f32 to vector<16x128xf32>
    %2 = arith.subf %1, %0 : vector<16x128xf32>
    %3 = math.exp %2 : vector<16x128xf32>
    %cst_1 = arith.constant 1.000000e+00 : f32
    %4 = vector.broadcast %cst_1 : f32 to vector<16x128xf32>
    %5 = arith.addf %4, %3 : vector<16x128xf32>
    %cst_2 = arith.constant 1.000000e+00 : f32
    %6 = vector.broadcast %cst_2 : f32 to vector<16x128xf32>
    %7 = arith.divf %6, %5 : vector<16x128xf32>
    %cst_3 = arith.constant 9.99999996E-13 : f32
    %8 = vector.broadcast %cst_3 : f32 to vector<16x128xf32>
    %9 = arith.addf %7, %8 : vector<16x128xf32>
    %10 = math.log %9 : vector<16x128xf32>
    %11 = arith.addf %0, %10 : vector<16x128xf32>
    %cst_4 = arith.constant dense<0xFF800000> : vector<16xf32>
    %12 = vector.multi_reduction <maximumf>, %11, %cst_4 [1] : vector<16x128xf32> to vector<16xf32>
    %13 = vector.shape_cast %12 : vector<16xf32> to vector<16x1xf32>
    %14 = vector.broadcast %13 : vector<16x1xf32> to vector<16x128xf32>
    %15 = arith.subf %11, %14 : vector<16x128xf32>
    %16 = math.exp %15 : vector<16x128xf32>
    %cst_5 = arith.constant dense<0.000000e+00> : vector<16xf32>
    %17 = vector.multi_reduction <add>, %16, %cst_5 [1] : vector<16x128xf32> to vector<16xf32>
    %18 = vector.shape_cast %17 : vector<16xf32> to vector<16x1xf32>
    %19 = vector.broadcast %18 : vector<16x1xf32> to vector<16x128xf32>
    %20 = arith.divf %16, %19 : vector<16x128xf32>
    %c0_6 = arith.constant 0 : index
    %c0_7 = arith.constant 0 : index
    %21 = vector.load %arg2[%c0_6, %c0_7] : memref<16x128xf32, #tpu.memory_space<vmem>>, vector<16x128xf32>
    tpu.vector_store %arg2[%c0_6, %c0_7], %20 {strides = array<i32>} : memref<16x128xf32, #tpu.memory_space<vmem>>, vector<16x128xf32>,
    return
  }
  func.func @transform_0(%arg0: i32) -> (i32, i32) {
    %c0_i32 = arith.constant 0 : i32
    %c0_i32_0 = arith.constant 0 : i32
    return %arg0, %c0_i32 : i32, i32
  }
  func.func @transform_1(%arg0: i32) -> (i32, i32) {
    %c0_i32 = arith.constant 0 : i32
    %c0_i32_0 = arith.constant 0 : i32
    return %arg0, %c0_i32 : i32, i32
  }
}

</mosaic_0001>

<llo_original>
// kernel: sigsoftmax.1
$region0: #{sigsoftmax.1}
  #allocation0 [shape = 'u32[]', space=smem, size = 0x4, offset = 0x4, fixed_abs, tag = 'smem constant byte address 0x4 - core index']
  #allocation1 [shape = 'u32[144,128]{1,0:T(1,128)}', space=vmem, size = 0x12000, scoped, tag = 'internal scratch']
  %s0 = inlined_call_operand.hbm [shape: f32[16,128], index: 0, kind: input, shape index: {}]
  %s1 = inlined_call_operand.hbm [shape: f32[16,128], index: 1, kind: output, shape index: {}]
  %s2 = sld [smem:[#allocation0]]
  $region18: #{sigsoftmax.1} parent=0
    _
  %s4 = ssub.s32 1, %s2
  %s5 = scalar_select 0, %s4, %s2
  $region1: #{sigsoftmax.1} parent=0
    #allocation2 [shape = 'u8[8192]{0}', space=vmem, size = 0x2000, scoped, tag = 'input window, operand 0, single buffered']
    #allocation3 [shape = 's32[1]{0}', space=sflag, size = 0x4, scoped, tag = 'scoped memory for sigsoftmax.1']
    #allocation4 [shape = 's32[1]{0}', space=sflag, size = 0x4, scoped, tag = 'scoped memory for sigsoftmax.1']
    #allocation5 [shape = 'u8[8192]{0}', space=vmem, size = 0x2000, scoped, tag = 'output window, operand 0, single buffered']
    %6 = vsyncpa [#allocation3], 0
    %7 = vsyncpa [#allocation4], 0
    // Predicated region
    $region2: #{sigsoftmax.1} parent=1 // pred_check
      _
    $region3: #{sigsoftmax.1} parent=1 // pred_check_branch
      %9 = sbr.rel (0) target = $region5
    $region4: #{sigsoftmax.1} parent=1 // pred_region
      %s11 = ssub.s32 256, 256
      %12 = vsyncadd [#allocation3], %s11
      %s13 = sshll.u32 [#allocation2], 4
      %s14 = int_to_ptr.vmem [resolvable:$true] %s13
      %19 = dma.hbm_to_vmem [thread:$0]  %s0, 256, %s14, [#allocation3], 128, 128, 8
    $region5: #{sigsoftmax.1} parent=1 // pred_fallthru
      _
    // Predicated region
    $region6: #{sigsoftmax.1} parent=1 // pred_check
      _
    $region7: #{sigsoftmax.1} parent=1 // pred_check_branch
      %21 = sbr.rel (0) target = $region9
    $region8: #{sigsoftmax.1} parent=1 // pred_region
      %22 = dma.done [#allocation3], 256
    $region9: #{sigsoftmax.1} parent=1 // pred_fallthru
      _
    %v23 = vld [vmem:[#allocation2] sm:$0xff]
    %v24 = vld [vmem:[#allocation2 + $0x8] sm:$0xff]
    %v25 = vsub.f32 0.0, %v23
    %v26 = vsub.f32 0.0, %v24
    %v27 = vmul.f32 %v25, 1.442695
    %v28 = vpow.pop %v27
    %v29 = vmul.f32 %v26, 1.442695
    %v30 = vpow.pop %v29
    %v31 = vadd.f32 %v28, 1.0
    %v32 = vadd.f32 %v30, 1.0
    %v33 = vrcp.pop %v31
    %v34 = vmul.f32 1.0, %v33
    %v35 = vrcp.pop %v32
    %v36 = vmul.f32 1.0, %v35
    %v37 = vadd.f32 %v34, 1e-12
    %v38 = vadd.f32 %v36, 1e-12
    %v39 = vlog2.pop %v37
    %v40 = vmul.f32 %v39, 0.6931472
    %v41 = vlog2.pop %v38
    %v42 = vmul.f32 %v41, 0.6931472
    %v43 = vadd.f32 %v23, %v40
    %v44 = vadd.f32 %v24, %v42
    %45 = vmax.xlane.f32.xlu0 %v43
    %v46 = vpop.xlane.xlu0 %45
    %47 = vmax.xlane.f32.xlu0 %v44
    %v48 = vpop.xlane.xlu0 %47
    %v49 = vsub.f32 %v43, %v46
    %v50 = vsub.f32 %v44, %v48
    %v51 = vmul.f32 %v49, 1.442695
    %v52 = vpow.pop %v51
    %v53 = vmul.f32 %v50, 1.442695
    %v54 = vpow.pop %v53
    %55 = vadd.xlane.f32.xlu0 %v52
    %v56 = vpop.xlane.xlu0 %55
    %57 = vadd.xlane.f32.xlu0 %v54
    %v58 = vpop.xlane.xlu0 %57
    %v59 = vrcp.pop %v56
    %v60 = vmul.f32 %v52, %v59
    %v61 = vrcp.pop %v58
    %v62 = vmul.f32 %v54, %v61
    %63 = vst [vmem:[#allocation5] sm:$0xff] %v60
    %64 = vst [vmem:[#allocation5 + $0x8] sm:$0xff] %v62
    // Predicated region
    $region10: #{sigsoftmax.1} parent=1 // pred_check
      _
    $region11: #{sigsoftmax.1} parent=1 // pred_check_branch
      %66 = sbr.rel (0) target = $region13
    $region12: #{sigsoftmax.1} parent=1 // pred_region
      %s68 = ssub.s32 256, 256
      %69 = vsyncadd [#allocation4], %s68
      %s70 = sshll.u32 [#allocation5], 4
      %s71 = int_to_ptr.vmem [resolvable:$true] %s70
      %76 = dma.vmem_to_hbm [thread:$0]  %s71, 256, %s1, [#allocation4], 128, 128, 8
    $region13: #{sigsoftmax.1} parent=1 // pred_fallthru
      _
    // Predicated region
    $region14: #{sigsoftmax.1} parent=1 // pred_check
      _
    $region15: #{sigsoftmax.1} parent=1 // pred_check_branch
      %78 = sbr.rel (0) target = $region17
    $region16: #{sigsoftmax.1} parent=1 // pred_region
      %79 = dma.done [#allocation4], 256
    $region17: #{sigsoftmax.1} parent=1 // pred_fallthru
      _
    %80 = vsyncpa [#allocation3], 1
    %81 = vsyncpa [#allocation4], 1

</llo_original>
